<compile_context>
chip_gen: v5e
topology: v5e:2x2
jax: 0.10.0
libtpu: 0.0.40
codegen_flags: <defaults>
</compile_context>

<pallas_src>
import functools
import math

import jax
import jax.numpy as jnp
from jax.experimental import pallas as pl
from jax.experimental.pallas import tpu as pltpu

_MASK_VALUE = -1e30  # large finite negative: NaN-safe vs. -inf under exp()


# -----------------------------------------------------------------------------
# Kernel 1: fused-head QKV projection.
#   x tile [ts, D] @ resident [D, D] weight slabs -> q/k/v in [B, H, S, dh].
# -----------------------------------------------------------------------------
def _qkv_proj_kernel(x_ref, wq_ref, wk_ref, wv_ref, bq_ref, bk_ref, bv_ref,
                     q_ref, k_ref, v_ref, *, n_heads, d_head):
    x = x_ref[0]                                                    # [ts, D]
    for w_ref, b_ref, o_ref in ((wq_ref, bq_ref, q_ref),
                                (wk_ref, bk_ref, k_ref),
                                (wv_ref, bv_ref, v_ref)):
        y = jnp.dot(x, w_ref[...], preferred_element_type=jnp.float32)
        y = (y + b_ref[...]).astype(o_ref.dtype)                    # [ts, D]
        # Columns are already head-contiguous; scatter them into the
        # [H, ts, dh] layout with static lane slices (no in-kernel transpose).
        for h in range(n_heads):
            o_ref[0, h] = y[:, h * d_head:(h + 1) * d_head]


# -----------------------------------------------------------------------------
# Kernel 2: flash attention (online softmax over kv tiles, all heads per step)
#           fused with the output projection.
# Grid: (B, nq, nkv); output block is resident across kv and written once.
# -----------------------------------------------------------------------------
def _flash_attn_outproj_kernel(q_ref, k_ref, v_ref, wo_ref, b_out_ref, o_ref,
                               m_ref, l_ref, acc_ref, ctx_ref, *, causal,
                               exp_dtype):
    qi = pl.program_id(1)
    kv = pl.program_id(2)
    nkv = pl.num_programs(2)
    _, n_heads, tq, d_head = q_ref.shape
    tk = k_ref.shape[2]

    @pl.when(kv == 0)
    def _():
        m_ref[...] = jnp.full_like(m_ref, -jnp.inf)
        l_ref[...] = jnp.zeros_like(l_ref)
        acc_ref[...] = jnp.zeros_like(acc_ref)

    def attend(apply_mask):
        q = q_ref[0]                                                # [H, tq, dh]
        k = k_ref[0]                                                # [H, tk, dh]
        v = v_ref[0]                                                # [H, tk, dh]
        # 1/sqrt(dh) is already folded into q (wrapper); contract over dh.
        s = jnp.einsum('hqd,hkd->hqk', q, k,
                       preferred_element_type=jnp.float32)          # [H, tq, tk]
        if apply_mask:
            row = qi * tq + jax.lax.broadcasted_iota(
                jnp.int32, (n_heads, tq, tk), 1)
            col = kv * tk + jax.lax.broadcasted_iota(
                jnp.int32, (n_heads, tq, tk), 2)
            s = jnp.where(col > row, _MASK_VALUE, s)
        m_prev = m_ref[...]
        m_new = jnp.maximum(m_prev, jnp.max(s, axis=-1, keepdims=True))
        alpha = jnp.exp(m_prev - m_new)                             # f32
        # bf16 exp (when compute dtype is bf16) roughly doubles EUP throughput
        # on v6e/v7x and feeds the PV matmul without an extra cast; on v5e the
        # compiler converts (correctness unaffected).
        p = jnp.exp((s - m_new).astype(exp_dtype))
        l_ref[...] = alpha * l_ref[...] + jnp.sum(
            p.astype(jnp.float32), axis=-1, keepdims=True)
        acc_ref[...] = alpha * acc_ref[...] + jnp.einsum(
            'hqk,hkd->hqd', p.astype(v.dtype), v,
            preferred_element_type=jnp.float32)
        m_ref[...] = m_new

    if causal:
        first_row = qi * tq
        last_row = first_row + tq - 1
        first_col = kv * tk
        last_col = first_col + tk - 1
        # Fully-visible tiles: no mask arithmetic at all (VALU relief).
        pl.when(last_col <= first_row)(lambda: attend(False))
        # Diagonal-straddling tiles: apply the mask.
        pl.when(jnp.logical_and(first_col <= last_row,
                                last_col > first_row))(lambda: attend(True))
        # Fully-masked tiles: compute skipped entirely; their K/V DMA is
        # elided by the clamped index_map in the wrapper.
    else:
        attend(False)

    @pl.when(kv == nkv - 1)
    def _():
        ctx = acc_ref[...] / l_ref[...]                             # [H, tq, dh] f32
        # Concatenate heads along lanes (static offsets) into [tq, D] so the
        # out_proj is one full-depth K = D matmul with resident Wo^T.
        for h in range(n_heads):
            ctx_ref[:, h * d_head:(h + 1) * d_head] = ctx[h].astype(ctx_ref.dtype)
        y = jnp.dot(ctx_ref[...], wo_ref[...],
                    preferred_element_type=jnp.float32)             # [tq, D]
        o_ref[0] = (y + b_out_ref[...]).astype(o_ref.dtype)


# -----------------------------------------------------------------------------
# Wrapper helpers
# -----------------------------------------------------------------------------
def _pick_tile(size, target):
    """Largest divisor of `size` <= target; prefer lane-friendly multiples of
    128, then multiples of 8, else `size` itself."""
    if size <= target:
        return size
    best8 = None
    for t in range(min(target, size), 0, -1):
        if size % t:
            continue
        if t % 128 == 0:
            return t
        if best8 is None and t % 8 == 0:
            best8 = t
    return best8 if best8 is not None else size


def _k2_vmem_bytes(n_heads, tq, tk, d_head, d_embed, cdt_size, out_size):
    """Conservative per-step VMEM estimate for kernel 2 (double-buffered)."""
    dbl = 2
    q_blk = dbl * n_heads * tq * d_head * cdt_size
    kv_blk = 2 * dbl * n_heads * tk * d_head * cdt_size
    w_blk = dbl * (d_embed * d_embed * cdt_size + d_embed * 4)
    o_blk = dbl * tq * d_embed * out_size
    # m/l pad their size-1 lane dim to a full 128-lane row.
    scratch = (2 * n_heads * tq * 128 + n_heads * tq * d_head) * 4 \
        + tq * d_embed * cdt_size
    live = 2 * n_heads * tq * tk * 4          # s / p tiles in flight
    return q_blk + kv_blk + w_blk + o_blk + scratch + live


def self_attention(x, w_in, b_in, w_out, b_out, *, n_heads, causal_mask=False,
                   compute_dtype=None, block_q=None, block_kv=None,
                   block_s=None, vmem_limit_bytes=48 * 1024 * 1024):
    """Forward pass of SelfAttention.

    x: [B, S, D]; w_in: [3D, D]; b_in: [3D]; w_out: [D, D]; b_out: [D].
    compute_dtype: dtype for q/k/v, weights and PV-matmul operands (pass
      jnp.bfloat16 for full-rate MXU; softmax stats / accumulators stay f32).
    """
    B, S, D = x.shape
    H = n_heads
    assert D % H == 0, "d_embed must be divisible by n_heads"
    dh = D // H
    out_dtype = x.dtype
    cdt = jnp.dtype(compute_dtype) if compute_dtype is not None else jnp.dtype(x.dtype)
    scale = 1.0 / math.sqrt(dh)

    # --- one-time wrapper-side weight layout (no in-kernel transposes) -------
    w_in_t = jnp.transpose(w_in)                              # [D, 3D]
    wq = (w_in_t[:, 0 * D:1 * D] * scale).astype(cdt)         # scale folded in
    wk = w_in_t[:, 1 * D:2 * D].astype(cdt)
    wv = w_in_t[:, 2 * D:3 * D].astype(cdt)
    bq = (b_in[0 * D:1 * D] * scale).reshape(1, D).astype(jnp.float32)
    bk = b_in[1 * D:2 * D].reshape(1, D).astype(jnp.float32)
    bv = b_in[2 * D:3 * D].reshape(1, D).astype(jnp.float32)
    woT = jnp.transpose(w_out).astype(cdt)                    # [D, D]
    b_out_2d = b_out.reshape(1, D).astype(jnp.float32)
    x_c = x.astype(cdt)

    # --- tile selection (VMEM-budget aware: v7x has 64 MiB) ------------------
    ts = block_s if block_s is not None else _pick_tile(S, 512)
    budget = int(vmem_limit_bytes * 0.85)
    tq = tk = S
    for target in (512, 256, 128):
        tq = block_q if block_q is not None else _pick_tile(S, target)
        tk = block_kv if block_kv is not None else _pick_tile(S, target)
        if _k2_vmem_bytes(H, tq, tk, dh, D, cdt.itemsize,
                          jnp.dtype(out_dtype).itemsize) <= budget:
            break
    assert S % ts == 0 and S % tq == 0 and S % tk == 0, \
        "sequence length must be divisible by the chosen tiles"
    # TODO(synk): pad S (and mask the remainder tile) for sequence lengths
    # without a lane/sublane-friendly divisor instead of asserting.

    # --- kernel 1: fused-head QKV projection ---------------------------------
    # TODO(synk): for very large D (>~2048 bf16 on v7x) tile the projection's
    # output columns so the resident [D, D] weight slabs fit VMEM.
    q, k, v = pl.pallas_call(
        functools.partial(_qkv_proj_kernel, n_heads=H, d_head=dh),
        out_shape=[jax.ShapeDtypeStruct((B, H, S, dh), cdt)] * 3,
        grid=(B, S // ts),
        in_specs=[
            pl.BlockSpec((1, ts, D), lambda b, si: (b, si, 0)),    # x tile
            pl.BlockSpec((D, D), lambda b, si: (0, 0)),            # Wq (resident)
            pl.BlockSpec((D, D), lambda b, si: (0, 0)),            # Wk (resident)
            pl.BlockSpec((D, D), lambda b, si: (0, 0)),            # Wv (resident)
            pl.BlockSpec((1, D), lambda b, si: (0, 0)),            # bq
            pl.BlockSpec((1, D), lambda b, si: (0, 0)),            # bk
            pl.BlockSpec((1, D), lambda b, si: (0, 0)),            # bv
        ],
        out_specs=[pl.BlockSpec((1, H, ts, dh),
                                lambda b, si: (b, 0, si, 0))] * 3,
        compiler_params=pltpu.CompilerParams(
            dimension_semantics=("parallel", "parallel"),
            vmem_limit_bytes=vmem_limit_bytes),
    )(x_c, wq, wk, wv, bq, bk, bv)

    # --- kernel 2: flash attention (all heads per step) + fused out_proj -----
    if causal_mask:
        def kv_index(b, qi, kv):
            # Clamp fully-masked kv tiles onto the last attended tile so their
            # K/V DMA is elided (their compute is skipped with pl.when).
            last_attended = ((qi + 1) * tq - 1) // tk
            return (b, 0, jnp.minimum(kv, last_attended), 0)
    else:
        def kv_index(b, qi, kv):
            return (b, 0, kv, 0)

    exp_dtype = jnp.bfloat16 if cdt == jnp.bfloat16 else jnp.float32
    kernel = functools.partial(_flash_attn_outproj_kernel,
                               causal=causal_mask, exp_dtype=exp_dtype)
    # Note: parallel extent is B * (S // tq); on v7x this should be >= 2 so
    # both TensorCores get work. K/V specs could use pipeline_mode=
    # pl.Buffered(3) if a profile shows their DMA exposed.
    y = pl.pallas_call(
        kernel,
        out_shape=jax.ShapeDtypeStruct((B, S, D), out_dtype),
        grid=(B, S // tq, S // tk),
        in_specs=[
            pl.BlockSpec((1, H, tq, dh), lambda b, qi, kv: (b, 0, qi, 0)),
            pl.BlockSpec((1, H, tk, dh), kv_index),
            pl.BlockSpec((1, H, tk, dh), kv_index),
            pl.BlockSpec((D, D), lambda b, qi, kv: (0, 0)),        # Wo^T (resident)
            pl.BlockSpec((1, D), lambda b, qi, kv: (0, 0)),        # b_out
        ],
        out_specs=pl.BlockSpec((1, tq, D), lambda b, qi, kv: (b, qi, 0)),
        scratch_shapes=[
            pltpu.VMEM((H, tq, 1), jnp.float32),    # m: running row max
            pltpu.VMEM((H, tq, 1), jnp.float32),    # l: running softmax denom
            pltpu.VMEM((H, tq, dh), jnp.float32),   # acc: unnormalized context
            pltpu.VMEM((tq, D), cdt),               # ctx: head-concat context
        ],
        compiler_params=pltpu.CompilerParams(
            dimension_semantics=("parallel", "parallel", "arbitrary"),
            vmem_limit_bytes=vmem_limit_bytes),
    )(q, k, v, woT, b_out_2d)
    return y


# -----------------------------------------------------------------------------
# Pure-JAX reference (mirrors the PyTorch forward) for correctness checking.
# -----------------------------------------------------------------------------
def _reference(x, w_in, b_in, w_out, b_out, *, n_heads, causal_mask=False):
    B, S, D = x.shape
    dh = D // n_heads
    qkv = jnp.einsum('bsd,ed->bse', x, w_in) + b_in
    q, k, v = jnp.split(qkv, 3, axis=-1)

    def heads(t):
        return t.reshape(B, S, n_heads, dh).transpose(0, 2, 1, 3)

    q, k, v = heads(q), heads(k), heads(v)
    w = jnp.einsum('bhqd,bhkd->bhqk', q, k)
    if causal_mask:
        mask = jnp.triu(jnp.ones((S, S), dtype=bool), 1)
        w = jnp.where(mask[None, None], -jnp.inf, w)
    w = w / math.sqrt(dh)
    w = jax.nn.softmax(w, axis=-1)
    o = jnp.einsum('bhqk,bhkd->bhqd', w, v)
    o = o.transpose(0, 2, 1, 3).reshape(B, S, D)
    return jnp.einsum('bsd,ed->bse', o, w_out) + b_out


if __name__ == "__main__":
    key = jax.random.PRNGKey(0)

    def make_params(k, B, S, D):
        kx, kwi, kbi, kwo, kbo = jax.random.split(k, 5)
        x = jax.random.normal(kx, (B, S, D), dtype=jnp.float32)
        w_in = jax.random.normal(kwi, (3 * D, D), dtype=jnp.float32) / math.sqrt(D)
        b_in = jax.random.normal(kbi, (3 * D,), dtype=jnp.float32) * 0.01
        w_out = jax.random.normal(kwo, (D, D), dtype=jnp.float32) / math.sqrt(D)
        b_out = jax.random.normal(kbo, (D,), dtype=jnp.float32) * 0.01
        return x, w_in, b_in, w_out, b_out

    # (B, S, D, H, block_q, block_kv, block_s, compute_dtype, atol)
    configs = [
        (2, 8, 32, 4, None, None, None, None, 2e-4),            # single-tile path
        (2, 64, 32, 4, 32, 16, 32, None, 2e-4),                 # multi-tile online softmax
        (1, 128, 64, 4, None, None, None, jnp.bfloat16, 1e-1),  # bf16 MXU / bf16-exp path
    ]

    for cfg_idx, (B, S, D, H, bq_t, bkv_t, bs_t, cdt, atol) in enumerate(configs):
        key, sub = jax.random.split(key)
        x, w_in, b_in, w_out, b_out = make_params(sub, B, S, D)
        for causal in (False, True):
            out = self_attention(x, w_in, b_in, w_out, b_out,
                                 n_heads=H, causal_mask=causal,
                                 compute_dtype=cdt,
                                 block_q=bq_t, block_kv=bkv_t, block_s=bs_t)
            out = jax.block_until_ready(out)
            ref = _reference(x, w_in, b_in, w_out, b_out,
                             n_heads=H, causal_mask=causal)
            assert out.shape == (B, S, D)
            err = float(jnp.max(jnp.abs(out.astype(jnp.float32) - ref)))
            assert err < atol, (
                f"mismatch cfg={cfg_idx} causal={causal} max_err={err}")

    print("KERNEL_OK")
</pallas_src>

<mosaic_0001>
module attributes {stable_mosaic.version = 11 : i64} {
  func.func @_qkv_proj_kernel(%arg0: i32, %arg1: i32, %arg2: memref<1x8x32xf32, #tpu.memory_space<vmem>>, %arg3: memref<32x32xf32, #tpu.memory_space<vmem>>, %arg4: memref<32x32xf32, #tpu.memory_space<vmem>>, %arg5: memref<32x32xf32, #tpu.memory_space<vmem>>, %arg6: memref<1x32xf32, #tpu.memory_space<vmem>>, %arg7: memref<1x32xf32, #tpu.memory_space<vmem>>, %arg8: memref<1x32xf32, #tpu.memory_space<vmem>>, %arg9: memref<1x4x8x8xf32, #tpu.memory_space<vmem>>, %arg10: memref<1x4x8x8xf32, #tpu.memory_space<vmem>>, %arg11: memref<1x4x8x8xf32, #tpu.memory_space<vmem>>) attributes {dimension_semantics = [#tpu.dimension_semantics<parallel>, #tpu.dimension_semantics<parallel>], iteration_bounds = array<i64: 2, 1>, scalar_prefetch = 0 : i64, scratch_operands = 0 : i64, tpu.core_type = #tpu.core_type<tc>, window_params = [{transform_indices = @transform_0, window_bounds = array<i64: 1, 8, 32>}, {pipeline_mode = #tpu.pipeline_mode<synchronous>, transform_indices = @transform_1, window_bounds = array<i64: 32, 32>}, {pipeline_mode = #tpu.pipeline_mode<synchronous>, transform_indices = @transform_2, window_bounds = array<i64: 32, 32>}, {pipeline_mode = #tpu.pipeline_mode<synchronous>, transform_indices = @transform_3, window_bounds = array<i64: 32, 32>}, {pipeline_mode = #tpu.pipeline_mode<synchronous>, transform_indices = @transform_4, window_bounds = array<i64: 1, 32>}, {pipeline_mode = #tpu.pipeline_mode<synchronous>, transform_indices = @transform_5, window_bounds = array<i64: 1, 32>}, {pipeline_mode = #tpu.pipeline_mode<synchronous>, transform_indices = @transform_6, window_bounds = array<i64: 1, 32>}, {transform_indices = @transform_7, window_bounds = array<i64: 1, 4, 8, 8>}, {transform_indices = @transform_8, window_bounds = array<i64: 1, 4, 8, 8>}, {transform_indices = @transform_9, window_bounds = array<i64: 1, 4, 8, 8>}]} {
    %c0 = arith.constant 0 : index
    %c0_0 = arith.constant 0 : index
    %c0_1 = arith.constant 0 : index
    %0 = vector.load %arg2[%c0, %c0_0, %c0_1] : memref<1x8x32xf32, #tpu.memory_space<vmem>>, vector<1x8x32xf32>
    %1 = vector.shape_cast %0 : vector<1x8x32xf32> to vector<8x32xf32>
    %c0_2 = arith.constant 0 : index
    %c0_3 = arith.constant 0 : index
    %2 = vector.load %arg3[%c0_2, %c0_3] : memref<32x32xf32, #tpu.memory_space<vmem>>, vector<32x32xf32>
    %cst = arith.constant dense<0.000000e+00> : vector<8x32xf32>
    %3 = tpu.matmul %1, %2, %cst {dimension_numbers = #tpu.dot_dimension_numbers<[1], [0], [0], [1], [0, 0, 1, 1], [], []>} : vector<8x32xf32>, vector<32x32xf32>, vector<8x32xf32> -> vector<8x32xf32>
    %c0_4 = arith.constant 0 : index
    %c0_5 = arith.constant 0 : index
    %4 = vector.load %arg6[%c0_4, %c0_5] : memref<1x32xf32, #tpu.memory_space<vmem>>, vector<1x32xf32>
    %5 = vector.broadcast %4 : vector<1x32xf32> to vector<8x32xf32>
    %6 = arith.addf %3, %5 : vector<8x32xf32>
    %7 = vector.extract_strided_slice %6 {offsets = [0, 0], sizes = [8, 8], strides = [1, 1]} : vector<8x32xf32> to vector<8x8xf32>
    %c0_6 = arith.constant 0 : index
    %c0_7 = arith.constant 0 : index
    %c0_8 = arith.constant 0 : index
    %c0_9 = arith.constant 0 : index
    %8 = vector.load %arg9[%c0_6, %c0_7, %c0_8, %c0_9] : memref<1x4x8x8xf32, #tpu.memory_space<vmem>>, vector<1x1x8x8xf32>
    %9 = vector.shape_cast %8 : vector<1x1x8x8xf32> to vector<8x8xf32>
    %10 = vector.shape_cast %7 : vector<8x8xf32> to vector<1x1x8x8xf32>
    tpu.vector_store %arg9[%c0_6, %c0_7, %c0_8, %c0_9], %10 {strides = array<i32>} : memref<1x4x8x8xf32, #tpu.memory_space<vmem>>, vector<1x1x8x8xf32>,
    %11 = vector.extract_strided_slice %6 {offsets = [0, 8], sizes = [8, 8], strides = [1, 1]} : vector<8x32xf32> to vector<8x8xf32>
    %c0_10 = arith.constant 0 : index
    %c1 = arith.constant 1 : index
    %c0_11 = arith.constant 0 : index
    %c0_12 = arith.constant 0 : index
    %12 = vector.load %arg9[%c0_10, %c1, %c0_11, %c0_12] : memref<1x4x8x8xf32, #tpu.memory_space<vmem>>, vector<1x1x8x8xf32>
    %13 = vector.shape_cast %12 : vector<1x1x8x8xf32> to vector<8x8xf32>
    %14 = vector.shape_cast %11 : vector<8x8xf32> to vector<1x1x8x8xf32>
    tpu.vector_store %arg9[%c0_10, %c1, %c0_11, %c0_12], %14 {strides = array<i32>} : memref<1x4x8x8xf32, #tpu.memory_space<vmem>>, vector<1x1x8x8xf32>,
    %15 = vector.extract_strided_slice %6 {offsets = [0, 16], sizes = [8, 8], strides = [1, 1]} : vector<8x32xf32> to vector<8x8xf32>
    %c0_13 = arith.constant 0 : index
    %c2 = arith.constant 2 : index
    %c0_14 = arith.constant 0 : index
    %c0_15 = arith.constant 0 : index
    %16 = vector.load %arg9[%c0_13, %c2, %c0_14, %c0_15] : memref<1x4x8x8xf32, #tpu.memory_space<vmem>>, vector<1x1x8x8xf32>
    %17 = vector.shape_cast %16 : vector<1x1x8x8xf32> to vector<8x8xf32>
    %18 = vector.shape_cast %15 : vector<8x8xf32> to vector<1x1x8x8xf32>
    tpu.vector_store %arg9[%c0_13, %c2, %c0_14, %c0_15], %18 {strides = array<i32>} : memref<1x4x8x8xf32, #tpu.memory_space<vmem>>, vector<1x1x8x8xf32>,
    %19 = vector.extract_strided_slice %6 {offsets = [0, 24], sizes = [8, 8], strides = [1, 1]} : vector<8x32xf32> to vector<8x8xf32>
    %c0_16 = arith.constant 0 : index
    %c3 = arith.constant 3 : index
    %c0_17 = arith.constant 0 : index
    %c0_18 = arith.constant 0 : index
    %20 = vector.load %arg9[%c0_16, %c3, %c0_17, %c0_18] : memref<1x4x8x8xf32, #tpu.memory_space<vmem>>, vector<1x1x8x8xf32>
    %21 = vector.shape_cast %20 : vector<1x1x8x8xf32> to vector<8x8xf32>
    %22 = vector.shape_cast %19 : vector<8x8xf32> to vector<1x1x8x8xf32>
    tpu.vector_store %arg9[%c0_16, %c3, %c0_17, %c0_18], %22 {strides = array<i32>} : memref<1x4x8x8xf32, #tpu.memory_space<vmem>>, vector<1x1x8x8xf32>,
    %c0_19 = arith.constant 0 : index
    %c0_20 = arith.constant 0 : index
    %23 = vector.load %arg4[%c0_19, %c0_20] : memref<32x32xf32, #tpu.memory_space<vmem>>, vector<32x32xf32>
    %cst_21 = arith.constant dense<0.000000e+00> : vector<8x32xf32>
    %24 = tpu.matmul %1, %23, %cst_21 {dimension_numbers = #tpu.dot_dimension_numbers<[1], [0], [0], [1], [0, 0, 1, 1], [], []>} : vector<8x32xf32>, vector<32x32xf32>, vector<8x32xf32> -> vector<8x32xf32>
    %c0_22 = arith.constant 0 : index
    %c0_23 = arith.constant 0 : index
    %25 = vector.load %arg7[%c0_22, %c0_23] : memref<1x32xf32, #tpu.memory_space<vmem>>, vector<1x32xf32>
    %26 = vector.broadcast %25 : vector<1x32xf32> to vector<8x32xf32>
    %27 = arith.addf %24, %26 : vector<8x32xf32>
    %28 = vector.extract_strided_slice %27 {offsets = [0, 0], sizes = [8, 8], strides = [1, 1]} : vector<8x32xf32> to vector<8x8xf32>
    %c0_24 = arith.constant 0 : index
    %c0_25 = arith.constant 0 : index
    %c0_26 = arith.constant 0 : index
    %c0_27 = arith.constant 0 : index
    %29 = vector.load %arg10[%c0_24, %c0_25, %c0_26, %c0_27] : memref<1x4x8x8xf32, #tpu.memory_space<vmem>>, vector<1x1x8x8xf32>
    %30 = vector.shape_cast %29 : vector<1x1x8x8xf32> to vector<8x8xf32>
    %31 = vector.shape_cast %28 : vector<8x8xf32> to vector<1x1x8x8xf32>
    tpu.vector_store %arg10[%c0_24, %c0_25, %c0_26, %c0_27], %31 {strides = array<i32>} : memref<1x4x8x8xf32, #tpu.memory_space<vmem>>, vector<1x1x8x8xf32>,
    %32 = vector.extract_strided_slice %27 {offsets = [0, 8], sizes = [8, 8], strides = [1, 1]} : vector<8x32xf32> to vector<8x8xf32>
    %c0_28 = arith.constant 0 : index
    %c1_29 = arith.constant 1 : index
    %c0_30 = arith.constant 0 : index
    %c0_31 = arith.constant 0 : index
    %33 = vector.load %arg10[%c0_28, %c1_29, %c0_30, %c0_31] : memref<1x4x8x8xf32, #tpu.memory_space<vmem>>, vector<1x1x8x8xf32>
    %34 = vector.shape_cast %33 : vector<1x1x8x8xf32> to vector<8x8xf32>
    %35 = vector.shape_cast %32 : vector<8x8xf32> to vector<1x1x8x8xf32>
    tpu.vector_store %arg10[%c0_28, %c1_29, %c0_30, %c0_31], %35 {strides = array<i32>} : memref<1x4x8x8xf32, #tpu.memory_space<vmem>>, vector<1x1x8x8xf32>,
    %36 = vector.extract_strided_slice %27 {offsets = [0, 16], sizes = [8, 8], strides = [1, 1]} : vector<8x32xf32> to vector<8x8xf32>
    %c0_32 = arith.constant 0 : index
    %c2_33 = arith.constant 2 : index
    %c0_34 = arith.constant 0 : index
    %c0_35 = arith.constant 0 : index
    %37 = vector.load %arg10[%c0_32, %c2_33, %c0_34, %c0_35] : memref<1x4x8x8xf32, #tpu.memory_space<vmem>>, vector<1x1x8x8xf32>
    %38 = vector.shape_cast %37 : vector<1x1x8x8xf32> to vector<8x8xf32>
    %39 = vector.shape_cast %36 : vector<8x8xf32> to vector<1x1x8x8xf32>
    tpu.vector_store %arg10[%c0_32, %c2_33, %c0_34, %c0_35], %39 {strides = array<i32>} : memref<1x4x8x8xf32, #tpu.memory_space<vmem>>, vector<1x1x8x8xf32>,
    %40 = vector.extract_strided_slice %27 {offsets = [0, 24], sizes = [8, 8], strides = [1, 1]} : vector<8x32xf32> to vector<8x8xf32>
    %c0_36 = arith.constant 0 : index
    %c3_37 = arith.constant 3 : index
    %c0_38 = arith.constant 0 : index
    %c0_39 = arith.constant 0 : index
    %41 = vector.load %arg10[%c0_36, %c3_37, %c0_38, %c0_39] : memref<1x4x8x8xf32, #tpu.memory_space<vmem>>, vector<1x1x8x8xf32>
    %42 = vector.shape_cast %41 : vector<1x1x8x8xf32> to vector<8x8xf32>
    %43 = vector.shape_cast %40 : vector<8x8xf32> to vector<1x1x8x8xf32>
    tpu.vector_store %arg10[%c0_36, %c3_37, %c0_38, %c0_39], %43 {strides = array<i32>} : memref<1x4x8x8xf32, #tpu.memory_space<vmem>>, vector<1x1x8x8xf32>,
    %c0_40 = arith.constant 0 : index
    %c0_41 = arith.constant 0 : index
    %44 = vector.load %arg5[%c0_40, %c0_41] : memref<32x32xf32, #tpu.memory_space<vmem>>, vector<32x32xf32>
    %cst_42 = arith.constant dense<0.000000e+00> : vector<8x32xf32>
    %45 = tpu.matmul %1, %44, %cst_42 {dimension_numbers = #tpu.dot_dimension_numbers<[1], [0], [0], [1], [0, 0, 1, 1], [], []>} : vector<8x32xf32>, vector<32x32xf32>, vector<8x32xf32> -> vector<8x32xf32>
    %c0_43 = arith.constant 0 : index
    %c0_44 = arith.constant 0 : index
    %46 = vector.load %arg8[%c0_43, %c0_44] : memref<1x32xf32, #tpu.memory_space<vmem>>, vector<1x32xf32>
    %47 = vector.broadcast %46 : vector<1x32xf32> to vector<8x32xf32>
    %48 = arith.addf %45, %47 : vector<8x32xf32>
    %49 = vector.extract_strided_slice %48 {offsets = [0, 0], sizes = [8, 8], strides = [1, 1]} : vector<8x32xf32> to vector<8x8xf32>
    %c0_45 = arith.constant 0 : index
    %c0_46 = arith.constant 0 : index
    %c0_47 = arith.constant 0 : index
    %c0_48 = arith.constant 0 : index
    %50 = vector.load %arg11[%c0_45, %c0_46, %c0_47, %c0_48] : memref<1x4x8x8xf32, #tpu.memory_space<vmem>>, vector<1x1x8x8xf32>
    %51 = vector.shape_cast %50 : vector<1x1x8x8xf32> to vector<8x8xf32>
    %52 = vector.shape_cast %49 : vector<8x8xf32> to vector<1x1x8x8xf32>
    tpu.vector_store %arg11[%c0_45, %c0_46, %c0_47, %c0_48], %52 {strides = array<i32>} : memref<1x4x8x8xf32, #tpu.memory_space<vmem>>, vector<1x1x8x8xf32>,
    %53 = vector.extract_strided_slice %48 {offsets = [0, 8], sizes = [8, 8], strides = [1, 1]} : vector<8x32xf32> to vector<8x8xf32>
    %c0_49 = arith.constant 0 : index
    %c1_50 = arith.constant 1 : index
    %c0_51 = arith.constant 0 : index
    %c0_52 = arith.constant 0 : index
    %54 = vector.load %arg11[%c0_49, %c1_50, %c0_51, %c0_52] : memref<1x4x8x8xf32, #tpu.memory_space<vmem>>, vector<1x1x8x8xf32>
    %55 = vector.shape_cast %54 : vector<1x1x8x8xf32> to vector<8x8xf32>
    %56 = vector.shape_cast %53 : vector<8x8xf32> to vector<1x1x8x8xf32>
    tpu.vector_store %arg11[%c0_49, %c1_50, %c0_51, %c0_52], %56 {strides = array<i32>} : memref<1x4x8x8xf32, #tpu.memory_space<vmem>>, vector<1x1x8x8xf32>,
    %57 = vector.extract_strided_slice %48 {offsets = [0, 16], sizes = [8, 8], strides = [1, 1]} : vector<8x32xf32> to vector<8x8xf32>
    %c0_53 = arith.constant 0 : index
    %c2_54 = arith.constant 2 : index
    %c0_55 = arith.constant 0 : index
    %c0_56 = arith.constant 0 : index
    %58 = vector.load %arg11[%c0_53, %c2_54, %c0_55, %c0_56] : memref<1x4x8x8xf32, #tpu.memory_space<vmem>>, vector<1x1x8x8xf32>
    %59 = vector.shape_cast %58 : vector<1x1x8x8xf32> to vector<8x8xf32>
    %60 = vector.shape_cast %57 : vector<8x8xf32> to vector<1x1x8x8xf32>
    tpu.vector_store %arg11[%c0_53, %c2_54, %c0_55, %c0_56], %60 {strides = array<i32>} : memref<1x4x8x8xf32, #tpu.memory_space<vmem>>, vector<1x1x8x8xf32>,
    %61 = vector.extract_strided_slice %48 {offsets = [0, 24], sizes = [8, 8], strides = [1, 1]} : vector<8x32xf32> to vector<8x8xf32>
    %c0_57 = arith.constant 0 : index
    %c3_58 = arith.constant 3 : index
    %c0_59 = arith.constant 0 : index
    %c0_60 = arith.constant 0 : index
    %62 = vector.load %arg11[%c0_57, %c3_58, %c0_59, %c0_60] : memref<1x4x8x8xf32, #tpu.memory_space<vmem>>, vector<1x1x8x8xf32>
    %63 = vector.shape_cast %62 : vector<1x1x8x8xf32> to vector<8x8xf32>
    %64 = vector.shape_cast %61 : vector<8x8xf32> to vector<1x1x8x8xf32>
    tpu.vector_store %arg11[%c0_57, %c3_58, %c0_59, %c0_60], %64 {strides = array<i32>} : memref<1x4x8x8xf32, #tpu.memory_space<vmem>>, vector<1x1x8x8xf32>,
    return
  }
  func.func @transform_0(%arg0: i32, %arg1: i32) -> (i32, i32, i32) {
    %c0_i32 = arith.constant 0 : i32
    %c0_i32_0 = arith.constant 0 : i32
    return %arg0, %arg1, %c0_i32 : i32, i32, i32
  }
  func.func @transform_1(%arg0: i32, %arg1: i32) -> (i32, i32) {
    %c0_i32 = arith.constant 0 : i32
    %c0_i32_0 = arith.constant 0 : i32
    %c0_i32_1 = arith.constant 0 : i32
    return %c0_i32, %c0_i32_0 : i32, i32
  }
  func.func @transform_2(%arg0: i32, %arg1: i32) -> (i32, i32) {
    %c0_i32 = arith.constant 0 : i32
    %c0_i32_0 = arith.constant 0 : i32
    %c0_i32_1 = arith.constant 0 : i32
    return %c0_i32, %c0_i32_0 : i32, i32
  }
  func.func @transform_3(%arg0: i32, %arg1: i32) -> (i32, i32) {
    %c0_i32 = arith.constant 0 : i32
    %c0_i32_0 = arith.constant 0 : i32
    %c0_i32_1 = arith.constant 0 : i32
    return %c0_i32, %c0_i32_0 : i32, i32
  }
  func.func @transform_4(%arg0: i32, %arg1: i32) -> (i32, i32) {
    %c0_i32 = arith.constant 0 : i32
    %c0_i32_0 = arith.constant 0 : i32
    %c0_i32_1 = arith.constant 0 : i32
    return %c0_i32, %c0_i32_0 : i32, i32
  }
  func.func @transform_5(%arg0: i32, %arg1: i32) -> (i32, i32) {
    %c0_i32 = arith.constant 0 : i32
    %c0_i32_0 = arith.constant 0 : i32
    %c0_i32_1 = arith.constant 0 : i32
    return %c0_i32, %c0_i32_0 : i32, i32
  }
  func.func @transform_6(%arg0: i32, %arg1: i32) -> (i32, i32) {
    %c0_i32 = arith.constant 0 : i32
    %c0_i32_0 = arith.constant 0 : i32
    %c0_i32_1 = arith.constant 0 : i32
    return %c0_i32, %c0_i32_0 : i32, i32
  }
  func.func @transform_7(%arg0: i32, %arg1: i32) -> (i32, i32, i32, i32) {
    %c0_i32 = arith.constant 0 : i32
    %c0_i32_0 = arith.constant 0 : i32
    %c0_i32_1 = arith.constant 0 : i32
    return %arg0, %c0_i32, %arg1, %c0_i32_0 : i32, i32, i32, i32
  }
  func.func @transform_8(%arg0: i32, %arg1: i32) -> (i32, i32, i32, i32) {
    %c0_i32 = arith.constant 0 : i32
    %c0_i32_0 = arith.constant 0 : i32
    %c0_i32_1 = arith.constant 0 : i32
    return %arg0, %c0_i32, %arg1, %c0_i32_0 : i32, i32, i32, i32
  }
  func.func @transform_9(%arg0: i32, %arg1: i32) -> (i32, i32, i32, i32) {
    %c0_i32 = arith.constant 0 : i32
    %c0_i32_0 = arith.constant 0 : i32
    %c0_i32_1 = arith.constant 0 : i32
    return %arg0, %c0_i32, %arg1, %c0_i32_0 : i32, i32, i32, i32
  }
}

</mosaic_0001>

<llo_original>
// kernel: tpu_custom_call.1
$region0: #{tpu_custom_call.1}
  #allocation0 [shape = 'u32[]', space=smem, size = 0x4, offset = 0x4, fixed_abs, tag = 'smem constant byte address 0x4 - core index']
  #allocation1 [shape = 'u32[72,128]{1,0:T(1,128)}', space=vmem, size = 0x9000, scoped, tag = 'internal scratch']
  %s0 = inlined_call_operand.hbm [shape: f32[2,8,32], index: 0, kind: input, shape index: {}]
  %s1 = inlined_call_operand.hbm [shape: f32[32,32], index: 1, kind: input, shape index: {}]
  %s2 = inlined_call_operand.hbm [shape: f32[32,32], index: 2, kind: input, shape index: {}]
  %s3 = inlined_call_operand.hbm [shape: f32[32,32], index: 3, kind: input, shape index: {}]
  %s4 = inlined_call_operand.vmem [shape: f32[1,32], index: 4, kind: input, shape index: {}]
  %s5 = inlined_call_operand.vmem [shape: f32[1,32], index: 5, kind: input, shape index: {}]
  %s6 = inlined_call_operand.vmem [shape: f32[1,32], index: 6, kind: input, shape index: {}]
  %s7 = inlined_call_operand.hbm [shape: f32[2,4,8,8], index: 7, kind: output, shape index: {0}]
  %s8 = inlined_call_operand.hbm [shape: f32[2,4,8,8], index: 8, kind: output, shape index: {1}]
  %s9 = inlined_call_operand.hbm [shape: f32[2,4,8,8], index: 9, kind: output, shape index: {2}]
  %10 = xla_tuple %s7, %s8, %s9
  %s11 = sld [smem:[#allocation0]]
  $region93: #{tpu_custom_call.1} parent=0
    _
  %s13 = ssub.s32 1, %s11
  %s14 = scalar_select 0, %s13, %s11
  $region1: #{tpu_custom_call.1} parent=0
    #allocation2 [shape = 'u8[8192]{0}', space=vmem, size = 0x2000, scoped, tag = 'input window, operand 0']
    #allocation3 [shape = 's32[2]{0}', space=sflag, size = 0x8, scoped, tag = 'scoped memory for tpu_custom_call.1']
    #allocation4 [shape = 's32[2]{0}', space=sflag, size = 0x8, scoped, tag = 'scoped memory for tpu_custom_call.1']
    #allocation5 [shape = 'u8[16384]{0}', space=vmem, size = 0x4000, scoped, tag = 'input window, operand 1, single buffered']
    #allocation6 [shape = 's32[1]{0}', space=sflag, size = 0x4, scoped, tag = 'scoped memory for tpu_custom_call.1']
    #allocation7 [shape = 'u8[16384]{0}', space=vmem, size = 0x4000, scoped, tag = 'input window, operand 2, single buffered']
    #allocation8 [shape = 'u8[16384]{0}', space=vmem, size = 0x4000, scoped, tag = 'input window, operand 3, single buffered']
    #allocation9 [shape = 's32[1]{0}', space=sflag, size = 0x4, scoped, tag = 'scoped memory for tpu_custom_call.1']
    #allocation10 [shape = 'u8[32768]{0}', space=vmem, size = 0x8000, scoped, tag = 'output window, operand 0']
    #allocation11 [shape = 'u8[32768]{0}', space=vmem, size = 0x8000, scoped, tag = 'output window, operand 1']
    #allocation12 [shape = 's32[2]{0}', space=sflag, size = 0x8, scoped, tag = 'scoped memory for tpu_custom_call.1']
    #allocation13 [shape = 'u8[32768]{0}', space=vmem, size = 0x8000, scoped, tag = 'output window, operand 2']
    %15 = vsyncpa [#allocation3], 0
    %s16 = scalar_lea.sflag [#allocation3], 1
    %17 = vsyncpa %s16, 0
    %18 = vsyncpa [#allocation6], 0
    %19 = vsyncpa [#allocation9], 0
    %20 = vsyncpa [#allocation4], 0
    %s21 = scalar_lea.sflag [#allocation4], 1
    %22 = vsyncpa %s21, 0
    %23 = vsyncpa [#allocation12], 0
    %s24 = scalar_lea.sflag [#allocation12], 1
    %25 = vsyncpa %s24, 0
    loop: start=0, step=1, limit=4
    $region2: #{tpu_custom_call.1} parent=1 // loop_pre_header
      _
    $region3: #{tpu_custom_call.1} parent=1 // loop_header
      %s27 = sphi 0, %s31
      %p28 = scmp.ge.s32.totalorder %s27, 4
      %s34 = sphi 0, %s46
      %s35 = sphi 0, %s42
      %s36 = sphi 0, %s34
      %s37 = sphi 0, %s35
      %s38 = sphi 0, %s36
      %s39 = sphi 0, %s37
      %s51 = sphi 0, %s53
      %s54 = sphi 0, %s51
      %s55 = sphi 0, %s54
      %s71 = sphi 0, %s55
      %s75 = sphi 0, %s75
      %s77 = sphi 0, %s75
      %s78 = sphi 0, %s77
      %s92 = sphi 0, %s78
      %s96 = sphi 0, %s96
      %s98 = sphi 0, %s96
      %s99 = sphi 0, %s98
      %s113 = sphi 0, %s99
      %s117 = sphi 0, %s117
      %s119 = sphi 0, %s117
      %s120 = sphi 0, %s119
      %s134 = sphi 0, %s120
      %s138 = sphi 0, %s138
      %s140 = sphi 0, %s138
      %s141 = sphi 0, %s140
      %s155 = sphi 0, %s141
      %s159 = sphi 0, %s159
      %s161 = sphi 0, %s159
      %s162 = sphi 0, %s161
      %s176 = sphi 0, %s162
      %s180 = sphi 0, %s180
      %s182 = sphi 0, %s180
      %s183 = sphi 0, %s182
      %s197 = sphi 0, %s183
      %s205 = sphi 0, %s207
      %s208 = sphi 0, %s205
      %s209 = sphi 0, %s208
      %s225 = sphi 0, %s209
      %s233 = sphi 0, %s235
      %s236 = sphi 0, %s233
      %s237 = sphi 0, %s236
      %s253 = sphi 0, %s237
      %s261 = sphi 0, %s263
      %s264 = sphi 0, %s261
      %s265 = sphi 0, %s264
      %s281 = sphi 0, %s265
    $region4: #{tpu_custom_call.1} parent=1 // loop_header_branch
      %30 = sbr.rel (%p28) target = $region8
    $region5: #{tpu_custom_call.1} parent=1 // loop_body
      %s32 = ssub.s32 %s27, 1
      %s33 = ssub.s32 %s27, 2
      %s40 = sadd.s32 1, %s35
      %p41 = scmp.ge.s32.totalorder %s40, 1
      %s42 = scalar_select %p41, 0, %s40
      %s43 = sadd.s32 1, %s34
      %s44 = scalar_select %p41, %s43, %s34
      %p45 = scmp.ge.s32.totalorder %s44, 2
      %s46 = scalar_select %p45, 0, %s44
      %s47 = ssub.s32 %s34, %s46
      %s48 = ssub.s32 %s35, %s42
      %s49 = sor.u32 %s47, %s48
      %p50 = scmp.eq.s32.totalorder %s49, 0
      %s52 = sadd.s32 %s51, 1
      %s53 = scalar_select %p50, %s51, %s52
      %p56 = pneg %p50
      %p57 = scmp.eq.s32.totalorder %s27, 1
      %p58 = por %p56, %p57
      %p59 = scmp.ne.s32.totalorder %s51, %s54
      %p60 = scmp.eq.s32.totalorder %s27, 0
      %p61 = por %p59, %p60
      %p62 = scmp.ne.s32.totalorder %s51, %s54
      %p63 = scmp.eq.s32.totalorder %s32, 1
      %p64 = por %p62, %p63
      %p65 = scmp.ne.s32.totalorder %s54, %s55
      %p66 = scmp.eq.s32.totalorder %s32, 0
      %p67 = por %p65, %p66
      %p68 = scmp.ne.s32.totalorder %s54, %s55
      %p69 = scmp.eq.s32.totalorder %s33, 1
      %p70 = por %p68, %p69
      %p72 = scmp.ne.s32.totalorder %s55, %s71
      %p73 = scmp.eq.s32.totalorder %s33, 0
      %p74 = por %p72, %p73
      %s76 = sadd.s32 %s75, 1
      %p79 = scmp.eq.s32.totalorder %s27, 1
      %p80 = scmp.ne.s32.totalorder %s75, %s77
      %p81 = scmp.eq.s32.totalorder %s27, 0
      %p82 = por %p80, %p81
      %p83 = scmp.ne.s32.totalorder %s75, %s77
      %p84 = scmp.eq.s32.totalorder %s32, 1
      %p85 = por %p83, %p84
      %p86 = scmp.ne.s32.totalorder %s77, %s78
      %p87 = scmp.eq.s32.totalorder %s32, 0
      %p88 = por %p86, %p87
      %p89 = scmp.ne.s32.totalorder %s77, %s78
      %p90 = scmp.eq.s32.totalorder %s33, 1
      %p91 = por %p89, %p90
      %p93 = scmp.ne.s32.totalorder %s78, %s92
      %p94 = scmp.eq.s32.totalorder %s33, 0
      %p95 = por %p93, %p94
      %s97 = sadd.s32 %s96, 1
      %p100 = scmp.eq.s32.totalorder %s27, 1
      %p101 = scmp.ne.s32.totalorder %s96, %s98
      %p102 = scmp.eq.s32.totalorder %s27, 0
      %p103 = por %p101, %p102
      %p104 = scmp.ne.s32.totalorder %s96, %s98
      %p105 = scmp.eq.s32.totalorder %s32, 1
      %p106 = por %p104, %p105
      %p107 = scmp.ne.s32.totalorder %s98, %s99
      %p108 = scmp.eq.s32.totalorder %s32, 0
      %p109 = por %p107, %p108
      %p110 = scmp.ne.s32.totalorder %s98, %s99
      %p111 = scmp.eq.s32.totalorder %s33, 1
      %p112 = por %p110, %p111
      %p114 = scmp.ne.s32.totalorder %s99, %s113
      %p115 = scmp.eq.s32.totalorder %s33, 0
      %p116 = por %p114, %p115
      %s118 = sadd.s32 %s117, 1
      %p121 = scmp.eq.s32.totalorder %s27, 1
      %p122 = scmp.ne.s32.totalorder %s117, %s119
      %p123 = scmp.eq.s32.totalorder %s27, 0
      %p124 = por %p122, %p123
      %p125 = scmp.ne.s32.totalorder %s117, %s119
      %p126 = scmp.eq.s32.totalorder %s32, 1
      %p127 = por %p125, %p126
      %p128 = scmp.ne.s32.totalorder %s119, %s120
      %p129 = scmp.eq.s32.totalorder %s32, 0
      %p130 = por %p128, %p129
      %p131 = scmp.ne.s32.totalorder %s119, %s120
      %p132 = scmp.eq.s32.totalorder %s33, 1
      %p133 = por %p131, %p132
      %p135 = scmp.ne.s32.totalorder %s120, %s134
      %p136 = scmp.eq.s32.totalorder %s33, 0
      %p137 = por %p135, %p136
      %s139 = sadd.s32 %s138, 1
      %p142 = scmp.eq.s32.totalorder %s27, 1
      %p143 = scmp.ne.s32.totalorder %s138, %s140
      %p144 = scmp.eq.s32.totalorder %s27, 0
      %p145 = por %p143, %p144
      %p146 = scmp.ne.s32.totalorder %s138, %s140
      %p147 = scmp.eq.s32.totalorder %s32, 1
      %p148 = por %p146, %p147
      %p149 = scmp.ne.s32.totalorder %s140, %s141
      %p150 = scmp.eq.s32.totalorder %s32, 0
      %p151 = por %p149, %p150
      %p152 = scmp.ne.s32.totalorder %s140, %s141
      %p153 = scmp.eq.s32.totalorder %s33, 1
      %p154 = por %p152, %p153
      %p156 = scmp.ne.s32.totalorder %s141, %s155
      %p157 = scmp.eq.s32.totalorder %s33, 0
      %p158 = por %p156, %p157
      %s160 = sadd.s32 %s159, 1
      %p163 = scmp.eq.s32.totalorder %s27, 1
      %p164 = scmp.ne.s32.totalorder %s159, %s161
      %p165 = scmp.eq.s32.totalorder %s27, 0
      %p166 = por %p164, %p165
      %p167 = scmp.ne.s32.totalorder %s159, %s161
      %p168 = scmp.eq.s32.totalorder %s32, 1
      %p169 = por %p167, %p168
      %p170 = scmp.ne.s32.totalorder %s161, %s162
      %p171 = scmp.eq.s32.totalorder %s32, 0
      %p172 = por %p170, %p171
      %p173 = scmp.ne.s32.totalorder %s161, %s162
      %p174 = scmp.eq.s32.totalorder %s33, 1
      %p175 = por %p173, %p174
      %p177 = scmp.ne.s32.totalorder %s162, %s176
      %p178 = scmp.eq.s32.totalorder %s33, 0
      %p179 = por %p177, %p178
      %s181 = sadd.s32 %s180, 1
      %p184 = scmp.eq.s32.totalorder %s27, 1
      %p185 = scmp.ne.s32.totalorder %s180, %s182
      %p186 = scmp.eq.s32.totalorder %s27, 0
      %p187 = por %p185, %p186
      %p188 = scmp.ne.s32.totalorder %s180, %s182
      %p189 = scmp.eq.s32.totalorder %s32, 1
      %p190 = por %p188, %p189
      %p191 = scmp.ne.s32.totalorder %s182, %s183
      %p192 = scmp.eq.s32.totalorder %s32, 0
      %p193 = por %p191, %p192
      %p194 = scmp.ne.s32.totalorder %s182, %s183
      %p195 = scmp.eq.s32.totalorder %s33, 1
      %p196 = por %p194, %p195
      %p198 = scmp.ne.s32.totalorder %s183, %s197
      %p199 = scmp.eq.s32.totalorder %s33, 0
      %p200 = por %p198, %p199
      %s201 = ssub.s32 %s34, %s46
      %s202 = ssub.s32 %s35, %s42
      %s203 = sor.u32 %s201, %s202
      %p204 = scmp.eq.s32.totalorder %s203, 0
      %s206 = sadd.s32 %s205, 1
      %s207 = scalar_select %p204, %s205, %s206
      %p210 = pneg %p204
      %p211 = scmp.eq.s32.totalorder %s27, 1
      %p212 = por %p210, %p211
      %p213 = scmp.ne.s32.totalorder %s205, %s208
      %p214 = scmp.eq.s32.totalorder %s27, 0
      %p215 = por %p213, %p214
      %p216 = scmp.ne.s32.totalorder %s205, %s208
      %p217 = scmp.eq.s32.totalorder %s32, 1
      %p218 = por %p216, %p217
      %p219 = scmp.ne.s32.totalorder %s208, %s209
      %p220 = scmp.eq.s32.totalorder %s32, 0
      %p221 = por %p219, %p220
      %p222 = scmp.ne.s32.totalorder %s208, %s209
      %p223 = scmp.eq.s32.totalorder %s33, 1
      %p224 = por %p222, %p223
      %p226 = scmp.ne.s32.totalorder %s209, %s225
      %p227 = scmp.eq.s32.totalorder %s33, 0
      %p228 = por %p226, %p227
      %s229 = ssub.s32 %s34, %s46
      %s230 = ssub.s32 %s35, %s42
      %s231 = sor.u32 %s229, %s230
      %p232 = scmp.eq.s32.totalorder %s231, 0
      %s234 = sadd.s32 %s233, 1
      %s235 = scalar_select %p232, %s233, %s234
      %p238 = pneg %p232
      %p239 = scmp.eq.s32.totalorder %s27, 1
      %p240 = por %p238, %p239
      %p241 = scmp.ne.s32.totalorder %s233, %s236
      %p242 = scmp.eq.s32.totalorder %s27, 0
      %p243 = por %p241, %p242
      %p244 = scmp.ne.s32.totalorder %s233, %s236
      %p245 = scmp.eq.s32.totalorder %s32, 1
      %p246 = por %p244, %p245
      %p247 = scmp.ne.s32.totalorder %s236, %s237
      %p248 = scmp.eq.s32.totalorder %s32, 0
      %p249 = por %p247, %p248
      %p250 = scmp.ne.s32.totalorder %s236, %s237
      %p251 = scmp.eq.s32.totalorder %s33, 1
      %p252 = por %p250, %p251
      %p254 = scmp.ne.s32.totalorder %s237, %s253
      %p255 = scmp.eq.s32.totalorder %s33, 0
      %p256 = por %p254, %p255
      %s257 = ssub.s32 %s34, %s46
      %s258 = ssub.s32 %s35, %s42
      %s259 = sor.u32 %s257, %s258
      %p260 = scmp.eq.s32.totalorder %s259, 0
      %s262 = sadd.s32 %s261, 1
      %s263 = scalar_select %p260, %s261, %s262
      %p266 = pneg %p260
      %p267 = scmp.eq.s32.totalorder %s27, 1
      %p268 = por %p266, %p267
      %p269 = scmp.ne.s32.totalorder %s261, %s264
      %p270 = scmp.eq.s32.totalorder %s27, 0
      %p271 = por %p269, %p270
      %p272 = scmp.ne.s32.totalorder %s261, %s264
      %p273 = scmp.eq.s32.totalorder %s32, 1
      %p274 = por %p272, %p273
      %p275 = scmp.ne.s32.totalorder %s264, %s265
      %p276 = scmp.eq.s32.totalorder %s32, 0
      %p277 = por %p275, %p276
      %p278 = scmp.ne.s32.totalorder %s264, %s265
      %p279 = scmp.eq.s32.totalorder %s33, 1
      %p280 = por %p278, %p279
      %p282 = scmp.ne.s32.totalorder %s265, %s281
      %p283 = scmp.eq.s32.totalorder %s33, 0
      %p284 = por %p282, %p283
      %p285 = scmp.le.s32.totalorder 1, %s27
      %p286 = scmp.lt.s32.totalorder %s27, 3
      %p287 = pnand %p285, %p286
      %p288 = pneg %p287
      // Predicated region
      $region9: #{tpu_custom_call.1} parent=5 // pred_check
        _
      $region10: #{tpu_custom_call.1} parent=5 // pred_check_branch
        %290 = sbr.rel (%p287) target = $region12
      $region11: #{tpu_custom_call.1} parent=5 // pred_region
        %s291 = ssub.s32 %s27, 1
        // Predicated region
        $region13: #{tpu_custom_call.1} parent=11 // pred_check
          %p292 = pneg %p88
        $region14: #{tpu_custom_call.1} parent=11 // pred_check_branch
          %294 = sbr.rel (%p292) target = $region16
        $region15: #{tpu_custom_call.1} parent=11 // pred_region
          %296 = vsyncadd [#allocation6], 0
          %s297 = sshll.u32 %s1, 4
          %s298 = int_to_ptr.hbm [resolvable:$true] %s297
          %s299 = sshll.u32 [#allocation5], 4
          %s300 = int_to_ptr.vmem [resolvable:$true] %s299
          %305 = dma.hbm_to_vmem [thread:$0]  %s298, 512, %s300, [#allocation6], 128, 128, 8
        $region16: #{tpu_custom_call.1} parent=11 // pred_fallthru
          _
        // Predicated region
        $region17: #{tpu_custom_call.1} parent=11 // pred_check
          %p306 = pneg %p109
        $region18: #{tpu_custom_call.1} parent=11 // pred_check_branch
          %308 = sbr.rel (%p306) target = $region20
        $region19: #{tpu_custom_call.1} parent=11 // pred_region
          %310 = vsyncadd [#allocation6], 0
          %s311 = sshll.u32 %s2, 4
          %s312 = int_to_ptr.hbm [resolvable:$true] %s311
          %s313 = sshll.u32 [#allocation7], 4
          %s314 = int_to_ptr.vmem [resolvable:$true] %s313
          %319 = dma.hbm_to_vmem [thread:$0]  %s312, 512, %s314, [#allocation6], 128, 128, 8
        $region20: #{tpu_custom_call.1} parent=11 // pred_fallthru
          _
        // Predicated region
        $region21: #{tpu_custom_call.1} parent=11 // pred_check
          %p320 = pneg %p130
        $region22: #{tpu_custom_call.1} parent=11 // pred_check_branch
          %322 = sbr.rel (%p320) target = $region24
        $region23: #{tpu_custom_call.1} parent=11 // pred_region
          %324 = vsyncadd [#allocation9], 0
          %s325 = sshll.u32 %s3, 4
          %s326 = int_to_ptr.hbm [resolvable:$true] %s325
          %s327 = sshll.u32 [#allocation8], 4
          %s328 = int_to_ptr.vmem [resolvable:$true] %s327
          %333 = dma.hbm_to_vmem [thread:$0]  %s326, 512, %s328, [#allocation9], 128, 128, 8
        $region24: #{tpu_custom_call.1} parent=11 // pred_fallthru
          _
        // Predicated region
        $region25: #{tpu_custom_call.1} parent=11 // pred_check
          %p334 = pneg %p151
        $region26: #{tpu_custom_call.1} parent=11 // pred_check_branch
          %336 = sbr.rel (%p334) target = $region28
        $region27: #{tpu_custom_call.1} parent=11 // pred_region
          _
        $region28: #{tpu_custom_call.1} parent=11 // pred_fallthru
          _
        // Predicated region
        $region29: #{tpu_custom_call.1} parent=11 // pred_check
          %p337 = pneg %p172
        $region30: #{tpu_custom_call.1} parent=11 // pred_check_branch
          %339 = sbr.rel (%p337) target = $region32
        $region31: #{tpu_custom_call.1} parent=11 // pred_region
          _
        $region32: #{tpu_custom_call.1} parent=11 // pred_fallthru
          _
        // Predicated region
        $region33: #{tpu_custom_call.1} parent=11 // pred_check
          %p340 = pneg %p193
        $region34: #{tpu_custom_call.1} parent=11 // pred_check_branch
          %342 = sbr.rel (%p340) target = $region36
        $region35: #{tpu_custom_call.1} parent=11 // pred_region
          _
        $region36: #{tpu_custom_call.1} parent=11 // pred_fallthru
          _
      $region12: #{tpu_custom_call.1} parent=5 // pred_fallthru
        _
      %p343 = scmp.lt.s32.totalorder %s27, 2
      // Predicated region
      $region37: #{tpu_custom_call.1} parent=5 // pred_check
        %p344 = pneg %p343
      $region38: #{tpu_custom_call.1} parent=5 // pred_check_branch
        %346 = sbr.rel (%p344) target = $region40
      $region39: #{tpu_custom_call.1} parent=5 // pred_region
        // Predicated region
        $region41: #{tpu_custom_call.1} parent=39 // pred_check
          %p347 = pneg %p61
        $region42: #{tpu_custom_call.1} parent=39 // pred_check_branch
          %349 = sbr.rel (%p347) target = $region44
        $region43: #{tpu_custom_call.1} parent=39 // pred_region
          %s350 = sand.u32 %s51, 1
          %s351 = scalar_lea.sflag [#allocation3], %s350
          %s352 = sand.u32 %s51, 1
          %s353 = smul.addr %s352, 8
          %s354 = scalar_lea.vmem [#allocation2], %s353
          %356 = vsyncadd %s351, 0
          %s357 = sadd.s32 %s35, %s34
          %s358 = smul.addr %s357, 8
          %s359 = scalar_lea.hbm %s0, %s358
          %s361 = sshll.u32 %s359, 4
          %s362 = int_to_ptr.hbm [resolvable:$true] %s361
          %s363 = sshll.u32 %s354, 4
          %s364 = int_to_ptr.vmem [resolvable:$true] %s363
          %366 = dma.hbm_to_vmem [thread:$0]  %s362, 128, %s364, %s351
        $region44: #{tpu_custom_call.1} parent=39 // pred_fallthru
          _
      $region40: #{tpu_custom_call.1} parent=5 // pred_fallthru
        _
      %p367 = scmp.le.s32.totalorder 1, %s27
      %p368 = scmp.lt.s32.totalorder %s27, 3
      %p369 = pnand %p367, %p368
      %p370 = pneg %p369
      // Predicated region
      $region45: #{tpu_custom_call.1} parent=5 // pred_check
        _
      $region46: #{tpu_custom_call.1} parent=5 // pred_check_branch
        %372 = sbr.rel (%p369) target = $region48
      $region47: #{tpu_custom_call.1} parent=5 // pred_region
        %s373 = ssub.s32 %s27, 1
        %s374 = sand.u32 %s54, 1
        %s375 = scalar_lea.sflag [#allocation3], %s374
        %s376 = sand.u32 %s54, 1
        %s377 = smul.addr %s376, 8
        %s378 = scalar_lea.vmem [#allocation2], %s377
        // Predicated region
        $region49: #{tpu_custom_call.1} parent=47 // pred_check
          %p379 = pneg %p67
        $region50: #{tpu_custom_call.1} parent=47 // pred_check_branch
          %381 = sbr.rel (%p379) target = $region52
        $region51: #{tpu_custom_call.1} parent=47 // pred_region
          %383 = dma.done %s375, 128
        $region52: #{tpu_custom_call.1} parent=47 // pred_fallthru
          _
        // Predicated region
        $region53: #{tpu_custom_call.1} parent=47 // pred_check
          %p384 = pneg %p88
        $region54: #{tpu_custom_call.1} parent=47 // pred_check_branch
          %386 = sbr.rel (%p384) target = $region56
        $region55: #{tpu_custom_call.1} parent=47 // pred_region
          %388 = dma.done [#allocation6], 512
        $region56: #{tpu_custom_call.1} parent=47 // pred_fallthru
          _
        // Predicated region
        $region57: #{tpu_custom_call.1} parent=47 // pred_check
          %p389 = pneg %p109
        $region58: #{tpu_custom_call.1} parent=47 // pred_check_branch
          %391 = sbr.rel (%p389) target = $region60
        $region59: #{tpu_custom_call.1} parent=47 // pred_region
          %393 = dma.done [#allocation6], 512
        $region60: #{tpu_custom_call.1} parent=47 // pred_fallthru
          _
        // Predicated region
        $region61: #{tpu_custom_call.1} parent=47 // pred_check
          %p394 = pneg %p130
        $region62: #{tpu_custom_call.1} parent=47 // pred_check_branch
          %396 = sbr.rel (%p394) target = $region64
        $region63: #{tpu_custom_call.1} parent=47 // pred_region
          %398 = dma.done [#allocation9], 512
        $region64: #{tpu_custom_call.1} parent=47 // pred_fallthru
          _
        %s399 = sand.u32 %s54, 1
        %s400 = scalar_lea.sflag [#allocation3], %s399
        %s401 = sand.u32 %s54, 1
        %s402 = smul.addr %s401, 8
        %s403 = scalar_lea.vmem [#allocation2], %s402
        %p404 = pneg %p67
        %p405 = pneg %p64
        %p406 = pneg %p88
        %p407 = pneg %p85
        %p408 = pneg %p109
        %p409 = pneg %p106
        %p410 = pneg %p130
        %p411 = pneg %p127
        %p412 = pneg %p151
        %p413 = pneg %p148
        %p414 = pneg %p172
        %p415 = pneg %p169
        %p416 = pneg %p193
        %p417 = pneg %p190
        %p418 = pneg %p221
        %p419 = pneg %p218
        %s420 = sand.u32 %s208, 1
        %s421 = scalar_lea.sflag [#allocation4], %s420
        %s422 = sand.u32 %s208, 1
        %s423 = smul.addr %s422, 32
        %s424 = scalar_lea.vmem [#allocation10], %s423
        %p425 = pneg %p249
        %p426 = pneg %p246
        %s427 = sand.u32 %s32, 1
        %s428 = scalar_lea.sflag [#allocation12], %s427
        %s429 = sand.u32 %s236, 1
        %s430 = smul.addr %s429, 32
        %s431 = scalar_lea.vmem [#allocation11], %s430
        %p432 = pneg %p277
        %p433 = pneg %p274
        %s434 = sand.u32 %s32, 1
        %s435 = scalar_lea.sflag [#allocation12], %s434
        %s436 = sand.u32 %s264, 1
        %s437 = smul.addr %s436, 32
        %s438 = scalar_lea.vmem [#allocation13], %s437
        %v439 = vld [vmem:[%s378] sm:$0xff]
        %v440 = vld [vmem:[#allocation5] sm:$0xff]
        %v441 = vld [vmem:[#allocation5 + $0x8] sm:$0xff]
        %v442 = vld [vmem:[#allocation5 + $0x10] sm:$0xff]
        %v443 = vld [vmem:[#allocation5 + $0x18] sm:$0xff]
        %v444 = vld [vmem:[%s4] sm:$0x1]
        %v446 = vperm.slane %v444, 0
        %vm448 = vcmask 261120
        %v450 = vsel %vm448, %v439, 0
        %452 = vmatpush.msra.mxu0 0.0
        %453 = vmatpush.msra.mxu0 0.0
        %454 = vmatpush.msra.mxu0 0.0
        %455 = vmatpush.msra.mxu0 0.0
        %456 = vmatpush.msra.mxu0 0.0
        %457 = vmatpush.msra.mxu0 0.0
        %458 = vmatpush.msra.mxu0 0.0
        %459 = vmatpush.msra.mxu0 0.0
        %460 = vmatpush.msra.mxu0 0.0
        %461 = vmatpush.msra.mxu0 0.0
        %462 = vmatpush.msra.mxu0 0.0
        %463 = vmatpush.msra.mxu0 0.0
        %464 = vmatpush.msra.mxu0 %v443
        %465 = vmatpush.msra.mxu0 %v442
        %466 = vmatpush.msra.mxu0 %v441
        %467 = vmatpush.msra.mxu0 %v440
        %468 = vmatmul.f32.gmra.mxu0 %v450
        %v469 = vpop.f32.mrf.mxu0
        %v470 = vadd.f32 %v446, %v469
        %471 = vdwg.mxu0
        %vm472 = vcmask 64512
        %473 = vst.msk [vmem:[%s424] sm:$0xff] %vm472, %v470
        %475 = vrot.lane.b32.xlu0 %v470, 120
        %v476 = vpop.permute.xlu0 %475
        %s478 = scalar_lea.vmem %s424, 8 [#allocation10]
        %479 = vst.msk [vmem:[%s478] sm:$0xff] %vm472, %v476
        %480 = vrot.lane.b32.xlu0 %v470, 112
        %v481 = vpop.permute.xlu0 %480
        %s483 = scalar_lea.vmem %s424, 16 [#allocation10]
        %484 = vst.msk [vmem:[%s483] sm:$0xff] %vm472, %v481
        %485 = vrot.lane.b32.xlu0 %v470, 104
        %v486 = vpop.permute.xlu0 %485
        %s488 = scalar_lea.vmem %s424, 24 [#allocation10]
        %489 = vst.msk [vmem:[%s488] sm:$0xff] %vm472, %v486
        %v490 = vld [vmem:[#allocation7] sm:$0xff]
        %v491 = vld [vmem:[#allocation7 + $0x8] sm:$0xff]
        %v492 = vld [vmem:[#allocation7 + $0x10] sm:$0xff]
        %v493 = vld [vmem:[#allocation7 + $0x18] sm:$0xff]
        %v494 = vld [vmem:[%s5] sm:$0x1]
        %v496 = vperm.slane %v494, 0
        %498 = vmatpush.msra.mxu0 0.0
        %499 = vmatpush.msra.mxu0 0.0
        %500 = vmatpush.msra.mxu0 0.0
        %501 = vmatpush.msra.mxu0 0.0
        %502 = vmatpush.msra.mxu0 0.0
        %503 = vmatpush.msra.mxu0 0.0
        %504 = vmatpush.msra.mxu0 0.0
        %505 = vmatpush.msra.mxu0 0.0
        %506 = vmatpush.msra.mxu0 0.0
        %507 = vmatpush.msra.mxu0 0.0
        %508 = vmatpush.msra.mxu0 0.0
        %509 = vmatpush.msra.mxu0 0.0
        %510 = vmatpush.msra.mxu0 %v493
        %511 = vmatpush.msra.mxu0 %v492
        %512 = vmatpush.msra.mxu0 %v491
        %513 = vmatpush.msra.mxu0 %v490
        %514 = vmatmul.f32.gmra.mxu0 %v450
        %v515 = vpop.f32.mrf.mxu0
        %v516 = vadd.f32 %v496, %v515
        %517 = vdwg.mxu0
        %518 = vst.msk [vmem:[%s431] sm:$0xff] %vm472, %v516
        %520 = vrot.lane.b32.xlu0 %v516, 120
        %v521 = vpop.permute.xlu0 %520
        %s523 = scalar_lea.vmem %s431, 8 [#allocation11]
        %524 = vst.msk [vmem:[%s523] sm:$0xff] %vm472, %v521
        %525 = vrot.lane.b32.xlu0 %v516, 112
        %v526 = vpop.permute.xlu0 %525
        %s528 = scalar_lea.vmem %s431, 16 [#allocation11]
        %529 = vst.msk [vmem:[%s528] sm:$0xff] %vm472, %v526
        %530 = vrot.lane.b32.xlu0 %v516, 104
        %v531 = vpop.permute.xlu0 %530
        %s533 = scalar_lea.vmem %s431, 24 [#allocation11]
        %534 = vst.msk [vmem:[%s533] sm:$0xff] %vm472, %v531
        %v535 = vld [vmem:[#allocation8] sm:$0xff]
        %v536 = vld [vmem:[#allocation8 + $0x8] sm:$0xff]
        %v537 = vld [vmem:[#allocation8 + $0x10] sm:$0xff]
        %v538 = vld [vmem:[#allocation8 + $0x18] sm:$0xff]
        %v539 = vld [vmem:[%s6] sm:$0x1]
        %v541 = vperm.slane %v539, 0
        %543 = vmatpush.msra.mxu0 0.0
        %544 = vmatpush.msra.mxu0 0.0
        %545 = vmatpush.msra.mxu0 0.0
        %546 = vmatpush.msra.mxu0 0.0
        %547 = vmatpush.msra.mxu0 0.0
        %548 = vmatpush.msra.mxu0 0.0
        %549 = vmatpush.msra.mxu0 0.0
        %550 = vmatpush.msra.mxu0 0.0
        %551 = vmatpush.msra.mxu0 0.0
        %552 = vmatpush.msra.mxu0 0.0
        %553 = vmatpush.msra.mxu0 0.0
        %554 = vmatpush.msra.mxu0 0.0
        %555 = vmatpush.msra.mxu0 %v538
        %556 = vmatpush.msra.mxu0 %v537
        %557 = vmatpush.msra.mxu0 %v536
        %558 = vmatpush.msra.mxu0 %v535
        %559 = vmatmul.f32.gmra.mxu0 %v450
        %v560 = vpop.f32.mrf.mxu0
        %v561 = vadd.f32 %v541, %v560
        %562 = vdwg.mxu0
        %563 = vst.msk [vmem:[%s438] sm:$0xff] %vm472, %v561
        %565 = vrot.lane.b32.xlu0 %v561, 120
        %v566 = vpop.permute.xlu0 %565
        %s568 = scalar_lea.vmem %s438, 8 [#allocation13]
        %569 = vst.msk [vmem:[%s568] sm:$0xff] %vm472, %v566
        %570 = vrot.lane.b32.xlu0 %v561, 112
        %v571 = vpop.permute.xlu0 %570
        %s573 = scalar_lea.vmem %s438, 16 [#allocation13]
        %574 = vst.msk [vmem:[%s573] sm:$0xff] %vm472, %v571
        %575 = vrot.lane.b32.xlu0 %v561, 104
        %v576 = vpop.permute.xlu0 %575
        %s578 = scalar_lea.vmem %s438, 24 [#allocation13]
        %579 = vst.msk [vmem:[%s578] sm:$0xff] %vm472, %v576
        %s580 = sand.u32 %s208, 1
        %s581 = scalar_lea.sflag [#allocation4], %s580
        %s582 = sand.u32 %s208, 1
        %s583 = smul.addr %s582, 32
        %s584 = scalar_lea.vmem [#allocation10], %s583
        %s585 = sand.u32 %s32, 1
        %s586 = scalar_lea.sflag [#allocation12], %s585
        %s587 = sand.u32 %s236, 1
        %s588 = smul.addr %s587, 32
        %s589 = scalar_lea.vmem [#allocation11], %s588
        %s590 = sand.u32 %s32, 1
        %s591 = scalar_lea.sflag [#allocation12], %s590
        %s592 = sand.u32 %s264, 1
        %s593 = smul.addr %s592, 32
        %s594 = scalar_lea.vmem [#allocation13], %s593
        // Predicated region
        $region65: #{tpu_custom_call.1} parent=47 // pred_check
          %p595 = pneg %p218
        $region66: #{tpu_custom_call.1} parent=47 // pred_check_branch
          %597 = sbr.rel (%p595) target = $region68
        $region67: #{tpu_custom_call.1} parent=47 // pred_region
          %599 = vsyncadd %s581, 0
          %s600 = smul.addr %s36, 4
          %s601 = sadd.s32 %s37, %s600
          %s602 = smul.addr %s601, 8
          %s603 = scalar_lea.hbm %s7, %s602
          %s604 = sshll.u32 %s584, 4
          %s605 = int_to_ptr.vmem [resolvable:$true] %s604
          %s606 = sshll.u32 %s603, 4
          %s607 = int_to_ptr.hbm [resolvable:$true] %s606
          %612 = dma.vmem_to_hbm [thread:$0]  %s605, 512, %s607, %s581, 128, 128, 8
        $region68: #{tpu_custom_call.1} parent=47 // pred_fallthru
          _
        // Predicated region
        $region69: #{tpu_custom_call.1} parent=47 // pred_check
          %p613 = pneg %p246
        $region70: #{tpu_custom_call.1} parent=47 // pred_check_branch
          %615 = sbr.rel (%p613) target = $region72
        $region71: #{tpu_custom_call.1} parent=47 // pred_region
          %617 = vsyncadd %s586, 0
          %s618 = smul.addr %s36, 4
          %s619 = sadd.s32 %s37, %s618
          %s620 = smul.addr %s619, 8
          %s621 = scalar_lea.hbm %s8, %s620
          %s622 = sshll.u32 %s589, 4
          %s623 = int_to_ptr.vmem [resolvable:$true] %s622
          %s624 = sshll.u32 %s621, 4
          %s625 = int_to_ptr.hbm [resolvable:$true] %s624
          %630 = dma.vmem_to_hbm [thread:$0]  %s623, 512, %s625, %s586, 128, 128, 8
        $region72: #{tpu_custom_call.1} parent=47 // pred_fallthru
          _
        // Predicated region
        $region73: #{tpu_custom_call.1} parent=47 // pred_check
          %p631 = pneg %p274
        $region74: #{tpu_custom_call.1} parent=47 // pred_check_branch
          %633 = sbr.rel (%p631) target = $region76
        $region75: #{tpu_custom_call.1} parent=47 // pred_region
          %635 = vsyncadd %s591, 0
          %s636 = smul.addr %s36, 4
          %s637 = sadd.s32 %s37, %s636
          %s638 = smul.addr %s637, 8
          %s639 = scalar_lea.hbm %s9, %s638
          %s640 = sshll.u32 %s594, 4
          %s641 = int_to_ptr.vmem [resolvable:$true] %s640
          %s642 = sshll.u32 %s639, 4
          %s643 = int_to_ptr.hbm [resolvable:$true] %s642
          %648 = dma.vmem_to_hbm [thread:$0]  %s641, 512, %s643, %s591, 128, 128, 8
        $region76: #{tpu_custom_call.1} parent=47 // pred_fallthru
          _
      $region48: #{tpu_custom_call.1} parent=5 // pred_fallthru
        _
      %p649 = scmp.le.s32.totalorder 2, %s27
      // Predicated region
      $region77: #{tpu_custom_call.1} parent=5 // pred_check
        %p650 = pneg %p649
      $region78: #{tpu_custom_call.1} parent=5 // pred_check_branch
        %652 = sbr.rel (%p650) target = $region80
      $region79: #{tpu_custom_call.1} parent=5 // pred_region
        %s653 = ssub.s32 %s27, 2
        // Predicated region
        $region81: #{tpu_custom_call.1} parent=79 // pred_check
          %p654 = pneg %p224
        $region82: #{tpu_custom_call.1} parent=79 // pred_check_branch
          %656 = sbr.rel (%p654) target = $region84
        $region83: #{tpu_custom_call.1} parent=79 // pred_region
          %s657 = sand.u32 %s209, 1
          %s658 = scalar_lea.sflag [#allocation4], %s657
          %s659 = sand.u32 %s209, 1
          %s660 = smul.addr %s659, 32
          %s661 = scalar_lea.vmem [#allocation10], %s660
          %663 = dma.done %s658, 512
        $region84: #{tpu_custom_call.1} parent=79 // pred_fallthru
          _
        // Predicated region
        $region85: #{tpu_custom_call.1} parent=79 // pred_check
          %p664 = pneg %p252
        $region86: #{tpu_custom_call.1} parent=79 // pred_check_branch
          %666 = sbr.rel (%p664) target = $region88
        $region87: #{tpu_custom_call.1} parent=79 // pred_region
          %s667 = sand.u32 %s33, 1
          %s668 = scalar_lea.sflag [#allocation12], %s667
          %s669 = sand.u32 %s237, 1
          %s670 = smul.addr %s669, 32
          %s671 = scalar_lea.vmem [#allocation11], %s670
          %673 = dma.done %s668, 512
        $region88: #{tpu_custom_call.1} parent=79 // pred_fallthru
          _
        // Predicated region
        $region89: #{tpu_custom_call.1} parent=79 // pred_check
          %p674 = pneg %p280
        $region90: #{tpu_custom_call.1} parent=79 // pred_check_branch
          %676 = sbr.rel (%p674) target = $region92
        $region91: #{tpu_custom_call.1} parent=79 // pred_region
          %s677 = sand.u32 %s33, 1
          %s678 = scalar_lea.sflag [#allocation12], %s677
          %s679 = sand.u32 %s265, 1
          %s680 = smul.addr %s679, 32
          %s681 = scalar_lea.vmem [#allocation13], %s680
          %683 = dma.done %s678, 512
        $region92: #{tpu_custom_call.1} parent=79 // pred_fallthru
          _
      $region80: #{tpu_custom_call.1} parent=5 // pred_fallthru
        _
    $region6: #{tpu_custom_call.1} parent=1 // loop_footer
      %s31 = sadd.s32 1, %s27
    $region7: #{tpu_custom_call.1} parent=1 // loop_footer_branch
      %26 = sbr.rel target = $region3
    $region8: #{tpu_custom_call.1} parent=1 // loop_exit
      _
    %684 = vsyncpa [#allocation3], 1
    %s685 = scalar_lea.sflag [#allocation3], 1
    %686 = vsyncpa %s685, 1
    %687 = vsyncpa [#allocation6], 1
    %688 = vsyncpa [#allocation9], 1
    %689 = vsyncpa [#allocation4], 1
    %s690 = scalar_lea.sflag [#allocation4], 1
    %691 = vsyncpa %s690, 1
    %692 = vsyncpa [#allocation12], 1
    %s693 = scalar_lea.sflag [#allocation12], 1
    %694 = vsyncpa %s693, 1

</llo_original>
